<compile_context>
chip_gen: v7x
topology: tpu7x:2x2x1
jax: 0.10.0
libtpu: 0.0.40
codegen_flags: <defaults>
</compile_context>

<pallas_src>
import numpy as np
import jax
import jax.numpy as jnp
from jax.experimental import pallas as pl
from jax.experimental.pallas import tpu as pltpu

# ---- static landmark index sets (from PreprocessLayer.__init__) -------------
LHAND = np.arange(468, 489, dtype=np.int32)              # idxs[0]
RHAND = np.arange(522, 543, dtype=np.int32)              # idxs[1]
FACE = np.array([0, 1, 10, 17, 39, 61, 70, 105, 107, 137, 152, 181,
                 269, 291, 300, 323, 334, 336, 405], dtype=np.int32)  # idxs[2]
POSE4 = np.array([500, 501, 502, 503], dtype=np.int32)   # idxs[4]

N_LMK = 543
N_FACE = len(FACE)          # 19
N_POSE = len(POSE4)         # 4
N_HAND = 21
N_OUT = N_FACE + N_POSE + N_HAND   # 44
N_PAD = 128                 # lane-dense padded output width
T_OUT = 64
M_ROWS = 3 * T_OUT          # 192: [x-plane rows | y-plane rows | z-plane rows]


def _sel_matrix(hand_idxs):
    """0/1 selection matrix: (543 landmarks) -> (44 output landmarks), lane-padded to 128."""
    S = np.zeros((N_LMK, N_PAD), np.float32)
    cols = np.concatenate([FACE, POSE4, hand_idxs])
    S[cols, np.arange(N_OUT)] = 1.0
    return S


S_LEFT = jnp.asarray(_sel_matrix(LHAND))     # (543, 128)
S_RIGHT = jnp.asarray(_sel_matrix(RHAND))    # (543, 128)


# ---------------------------- Pallas kernel ----------------------------------
def _preprocess_kernel(prm_ref, x_ref, sel_ref, o_ref):
    # prm_ref : SMEM (2,)        int32  -- [is_left_dominant, n_valid_frames]
    # x_ref   : VMEM (192, 543)  f32    -- kept (0-fill padded) frames, coord-major
    #                                      rows 0..63 = x, 64..127 = y, 128..191 = z
    # sel_ref : VMEM (543, 128)  f32    -- 0/1 landmark selection, lane-padded 44->128
    # o_ref   : VMEM (192, 128)  f32    -- output, same coord-major row layout
    is_left = prm_ref[0] == 1
    n_valid = prm_ref[1]

    xall = x_ref[...]                                              # (192, 543)
    xall = jnp.where(jnp.isnan(xall), 0.0, xall)                   # NaN -> 0

    # single fused MXU matmul: all three coordinate planes select 543 -> 44(+pad)
    o = jnp.dot(xall, sel_ref[...], preferred_element_type=jnp.float32)  # (192, 128)

    row = jax.lax.broadcasted_iota(jnp.int32, (T_OUT, N_PAD), 0)   # output frame slot
    col = jax.lax.broadcasted_iota(jnp.int32, (T_OUT, N_PAD), 1)   # output landmark
    valid = row < n_valid                                          # pad_zeros mask
    hand_cols = jnp.logical_and(col >= N_FACE + N_POSE, col < N_OUT)

    ox = o[0:T_OUT]                                                # (64, 128)
    oy = o[T_OUT:2 * T_OUT]
    oz = o[2 * T_OUT:3 * T_OUT]

    # force_right_hand: each real sel column has exactly one 1, so (1-x)@S == 1 - x@S.
    # Padded columns (>=44) get garbage 1.0 here; they are sliced off in the wrapper.
    ox = jnp.where(is_left, 1.0 - ox, ox)

    # update_wrist: add pose wrist z (landmark 502 if left dominant, else 503) to the
    # 21 hand columns of the z plane.
    zplane = xall[2 * T_OUT:3 * T_OUT]                             # (64, 543)
    zw = jnp.where(is_left, zplane[:, 502:503], zplane[:, 503:504])  # (64, 1)
    oz = jnp.where(hand_cols, oz + zw, oz)

    o_ref[0:T_OUT] = jnp.where(valid, ox, 0.0)
    o_ref[T_OUT:2 * T_OUT] = jnp.where(valid, oy, 0.0)
    o_ref[2 * T_OUT:3 * T_OUT] = jnp.where(valid, oz, 0.0)


# ------------------------------ JAX glue --------------------------------------
def _nanstd_unbiased(v):
    """torch .std() (ddof=1) over the non-NaN elements of v (flattened)."""
    m = ~jnp.isnan(v)
    n = jnp.sum(m.astype(jnp.float32))
    vz = jnp.where(m, v, 0.0)
    mean = jnp.sum(vz) / n
    var = jnp.sum(jnp.where(m, (v - mean) ** 2, 0.0)) / (n - 1.0)
    return jnp.sqrt(var)


def _select_use_right(x):
    """select_dominant_hand: True -> right-hand indices, False -> left."""
    lhand = x[:, LHAND, :2]
    rhand = x[:, RHAND, :2]
    pct_l = jnp.mean(jnp.isnan(lhand).astype(jnp.float32))
    pct_r = jnp.mean(jnp.isnan(rhand).astype(jnp.float32))
    l_energy = _nanstd_unbiased(lhand[..., 0]) + _nanstd_unbiased(lhand[..., 1])
    r_energy = _nanstd_unbiased(rhand[..., 0]) + _nanstd_unbiased(rhand[..., 1])
    use_right = jnp.where(pct_l == 1.0, True,
                jnp.where(pct_r == 1.0, False,
                jnp.where(pct_l > 0.9, True,
                jnp.where(pct_r > 0.9, False,
                          r_energy >= l_energy))))
    return use_right


@jax.jit
def preprocess(x):
    """x: (T, 543, 3) float32 (may contain NaNs) -> (1, 3, 64, 44, 1) float32."""
    use_right = _select_use_right(x)
    hand_idx = jnp.where(use_right, jnp.asarray(RHAND), jnp.asarray(LHAND))

    # drop_frames_from_dominant_hand: keep frames where not all hand x/y are NaN
    hand_xy = jnp.take(x, hand_idx, axis=1)[..., :2]
    keep = ~jnp.all(jnp.isnan(hand_xy), axis=(1, 2))
    kept_idx = jnp.nonzero(keep, size=T_OUT, fill_value=0)[0].astype(jnp.int32)
    n_valid = jnp.minimum(jnp.sum(keep.astype(jnp.int32)), T_OUT).astype(jnp.int32)
    is_left = jnp.logical_not(use_right).astype(jnp.int32)
    params = jnp.stack([is_left, n_valid]).astype(jnp.int32)

    sel = jnp.where(use_right, S_RIGHT, S_LEFT)               # (543, 128)

    # compact kept frames first (64 frames regardless of T), then lay out coord-major
    xg = jnp.take(x, kept_idx, axis=0)                        # (64, 543, 3)
    xg = jnp.transpose(xg, (2, 0, 1))                         # (3, 64, 543)
    xg = xg.reshape(M_ROWS, N_LMK)                            # (192, 543)

    grid_spec = pltpu.PrefetchScalarGridSpec(
        num_scalar_prefetch=1,
        grid=(1,),
        in_specs=[
            pl.BlockSpec((M_ROWS, N_LMK), lambda i, prm: (0, 0)),
            pl.BlockSpec((N_LMK, N_PAD), lambda i, prm: (0, 0)),
        ],
        out_specs=pl.BlockSpec((M_ROWS, N_PAD), lambda i, prm: (0, 0)),
    )
    out = pl.pallas_call(
        _preprocess_kernel,
        out_shape=jax.ShapeDtypeStruct((M_ROWS, N_PAD), jnp.float32),
        grid_spec=grid_spec,
        compiler_params=pltpu.CompilerParams(dimension_semantics=("arbitrary",)),
    )(params, xg, sel)

    out = out.reshape(3, T_OUT, N_PAD)[:, :, :N_OUT]          # (3, 64, 44)
    return out[None, :, :, :, None]                           # (1, 3, 64, 44, 1)


# ----------------------- pure-JAX reference (default flags) -------------------
def reference(x):
    use_right = _select_use_right(x)
    is_left = jnp.logical_not(use_right)
    hand_idx = jnp.where(use_right, jnp.asarray(RHAND), jnp.asarray(LHAND))
    hand_xy = jnp.take(x, hand_idx, axis=1)[..., :2]
    keep = ~jnp.all(jnp.isnan(hand_xy), axis=(1, 2))
    kept_idx = jnp.nonzero(keep, size=T_OUT, fill_value=0)[0]
    n_valid = jnp.minimum(jnp.sum(keep.astype(jnp.int32)), T_OUT)

    xf = x[kept_idx]                                          # (64, 543, 3)
    xf = jnp.where(jnp.isnan(xf), 0.0, xf)
    xs = jnp.where(is_left, 1.0 - xf[..., 0], xf[..., 0])
    xf = jnp.concatenate([xs[..., None], xf[..., 1:]], axis=2)

    face = xf[:, FACE, :]
    pose = xf[:, POSE4, :]
    hand = jnp.take(xf, hand_idx, axis=1)
    zwrist = jnp.where(is_left, xf[:, 502, 2], xf[:, 503, 2])[:, None]
    hand = jnp.concatenate([hand[:, :, :2], (hand[:, :, 2] + zwrist)[..., None]],
                           axis=2)
    out = jnp.concatenate([face, pose, hand], axis=1)         # (64, 44, 3)
    valid = (jnp.arange(T_OUT) < n_valid)[:, None, None]
    out = jnp.where(valid, out, 0.0)
    out = jnp.transpose(out, (2, 0, 1))                       # (3, 64, 44)
    return out[None, :, :, :, None]


# ----------------------------------- main --------------------------------------
if __name__ == "__main__":
    key = jax.random.PRNGKey(0)
    T = 12
    x = np.array(jax.random.uniform(key, (T, N_LMK, 3), dtype=jnp.float32))
    # right hand missing in frames 0..10  -> left hand becomes dominant (>90% rule)
    x[0:11, RHAND, 0:2] = np.nan
    # dominant (left) hand fully missing (x,y) in frames 3 and 7 -> frames dropped
    x[3, LHAND, 0:2] = np.nan
    x[7, LHAND, 0:2] = np.nan
    # scattered NaNs elsewhere to exercise NaN -> 0 (and x-mirroring of zeroed NaNs)
    x[5, 0, 0] = np.nan
    x[6, 10, :] = np.nan
    x[2, LHAND[:5], 2] = np.nan
    x = jnp.asarray(x)

    out = jax.block_until_ready(preprocess(x))
    ref = jax.block_until_ready(reference(x))

    assert out.shape == (1, 3, T_OUT, N_OUT, 1), out.shape
    assert np.all(np.isfinite(np.asarray(out)))
    np.testing.assert_allclose(np.asarray(out), np.asarray(ref),
                               rtol=1e-5, atol=1e-5)
    print("KERNEL_OK")
</pallas_src>

<mosaic_0001>
module attributes {stable_mosaic.version = 11 : i64} {
  func.func @_preprocess_kernel(%arg0: i32, %arg1: memref<2xi32, #tpu.memory_space<smem>>, %arg2: memref<192x543xf32, #tpu.memory_space<vmem>>, %arg3: memref<543x128xf32, #tpu.memory_space<vmem>>, %arg4: memref<192x128xf32, #tpu.memory_space<vmem>>) attributes {dimension_semantics = [#tpu.dimension_semantics<arbitrary>], iteration_bounds = array<i64: 1>, scalar_prefetch = 1 : i64, scratch_operands = 0 : i64, tpu.core_type = #tpu.core_type<tc>, window_params = [{pipeline_mode = #tpu.pipeline_mode<synchronous>, transform_indices = @transform_0, window_bounds = array<i64: 192, 543>}, {pipeline_mode = #tpu.pipeline_mode<synchronous>, transform_indices = @transform_1, window_bounds = array<i64: 543, 128>}, {pipeline_mode = #tpu.pipeline_mode<synchronous>, transform_indices = @transform_2, window_bounds = array<i64: 192, 128>}]} {
    %c0 = arith.constant 0 : index
    %0 = memref.load %arg1[%c0] : memref<2xi32, #tpu.memory_space<smem>>
    %c1_i32 = arith.constant 1 : i32
    %1 = arith.cmpi eq, %0, %c1_i32 : i32
    %c1 = arith.constant 1 : index
    %2 = memref.load %arg1[%c1] : memref<2xi32, #tpu.memory_space<smem>>
    %c0_0 = arith.constant 0 : index
    %c0_1 = arith.constant 0 : index
    %3 = vector.load %arg2[%c0_0, %c0_1] : memref<192x543xf32, #tpu.memory_space<vmem>>, vector<192x543xf32>
    %4 = arith.cmpf one, %3, %3 : vector<192x543xf32>
    %cst = arith.constant 0.000000e+00 : f32
    %5 = vector.broadcast %cst : f32 to vector<192x543xf32>
    %6 = arith.select %4, %5, %3 : vector<192x543xi1>, vector<192x543xf32>
    %c0_2 = arith.constant 0 : index
    %c0_3 = arith.constant 0 : index
    %7 = vector.load %arg3[%c0_2, %c0_3] : memref<543x128xf32, #tpu.memory_space<vmem>>, vector<543x128xf32>
    %cst_4 = arith.constant dense<0.000000e+00> : vector<192x128xf32>
    %8 = tpu.matmul %6, %7, %cst_4 {dimension_numbers = #tpu.dot_dimension_numbers<[1], [0], [0], [1], [0, 0, 1, 1], [], []>} : vector<192x543xf32>, vector<543x128xf32>, vector<192x128xf32> -> vector<192x128xf32>
    %9 = tpu.iota {dimensions = array<i32: 0>} : vector<64x128xi32>
    %10 = tpu.iota {dimensions = array<i32: 1>} : vector<64x128xi32>
    %11 = vector.broadcast %2 : i32 to vector<64x128xi32>
    %12 = arith.cmpi slt, %9, %11 : vector<64x128xi32>
    %c23_i32 = arith.constant 23 : i32
    %13 = vector.broadcast %c23_i32 : i32 to vector<64x128xi32>
    %14 = arith.cmpi sge, %10, %13 : vector<64x128xi32>
    %c44_i32 = arith.constant 44 : i32
    %15 = vector.broadcast %c44_i32 : i32 to vector<64x128xi32>
    %16 = arith.cmpi slt, %10, %15 : vector<64x128xi32>
    %17 = arith.andi %14, %16 : vector<64x128xi1>
    %18 = vector.extract_strided_slice %8 {offsets = [0, 0], sizes = [64, 128], strides = [1, 1]} : vector<192x128xf32> to vector<64x128xf32>
    %19 = vector.extract_strided_slice %8 {offsets = [64, 0], sizes = [64, 128], strides = [1, 1]} : vector<192x128xf32> to vector<64x128xf32>
    %20 = vector.extract_strided_slice %8 {offsets = [128, 0], sizes = [64, 128], strides = [1, 1]} : vector<192x128xf32> to vector<64x128xf32>
    %cst_5 = arith.constant 1.000000e+00 : f32
    %21 = vector.broadcast %cst_5 : f32 to vector<64x128xf32>
    %22 = arith.subf %21, %18 : vector<64x128xf32>
    %23 = arith.select %1, %22, %18 : vector<64x128xf32>
    %24 = vector.extract_strided_slice %6 {offsets = [128, 0], sizes = [64, 543], strides = [1, 1]} : vector<192x543xf32> to vector<64x543xf32>
    %25 = vector.extract_strided_slice %24 {offsets = [0, 502], sizes = [64, 1], strides = [1, 1]} : vector<64x543xf32> to vector<64x1xf32>
    %26 = vector.extract_strided_slice %24 {offsets = [0, 503], sizes = [64, 1], strides = [1, 1]} : vector<64x543xf32> to vector<64x1xf32>
    %27 = arith.select %1, %25, %26 : vector<64x1xf32>
    %28 = vector.broadcast %27 : vector<64x1xf32> to vector<64x128xf32>
    %29 = arith.addf %20, %28 : vector<64x128xf32>
    %30 = arith.select %17, %29, %20 : vector<64x128xi1>, vector<64x128xf32>
    %cst_6 = arith.constant 0.000000e+00 : f32
    %31 = vector.broadcast %cst_6 : f32 to vector<64x128xf32>
    %32 = arith.select %12, %23, %31 : vector<64x128xi1>, vector<64x128xf32>
    %c0_7 = arith.constant 0 : index
    %c0_8 = arith.constant 0 : index
    %33 = vector.load %arg4[%c0_7, %c0_8] : memref<192x128xf32, #tpu.memory_space<vmem>>, vector<64x128xf32>
    tpu.vector_store %arg4[%c0_7, %c0_8], %32 {strides = array<i32>} : memref<192x128xf32, #tpu.memory_space<vmem>>, vector<64x128xf32>,
    %cst_9 = arith.constant 0.000000e+00 : f32
    %34 = vector.broadcast %cst_9 : f32 to vector<64x128xf32>
    %35 = arith.select %12, %19, %34 : vector<64x128xi1>, vector<64x128xf32>
    %c64 = arith.constant 64 : index
    %c0_10 = arith.constant 0 : index
    %36 = vector.load %arg4[%c64, %c0_10] : memref<192x128xf32, #tpu.memory_space<vmem>>, vector<64x128xf32>
    tpu.vector_store %arg4[%c64, %c0_10], %35 {strides = array<i32>} : memref<192x128xf32, #tpu.memory_space<vmem>>, vector<64x128xf32>,
    %cst_11 = arith.constant 0.000000e+00 : f32
    %37 = vector.broadcast %cst_11 : f32 to vector<64x128xf32>
    %38 = arith.select %12, %30, %37 : vector<64x128xi1>, vector<64x128xf32>
    %c128 = arith.constant 128 : index
    %c0_12 = arith.constant 0 : index
    %39 = vector.load %arg4[%c128, %c0_12] : memref<192x128xf32, #tpu.memory_space<vmem>>, vector<64x128xf32>
    tpu.vector_store %arg4[%c128, %c0_12], %38 {strides = array<i32>} : memref<192x128xf32, #tpu.memory_space<vmem>>, vector<64x128xf32>,
    return
  }
  func.func @transform_0(%arg0: i32, %arg1: memref<2xi32, #tpu.memory_space<smem>>) -> (i32, i32) {
    %c0_i32 = arith.constant 0 : i32
    %c0_i32_0 = arith.constant 0 : i32
    %c0_i32_1 = arith.constant 0 : i32
    return %c0_i32, %c0_i32_0 : i32, i32
  }
  func.func @transform_1(%arg0: i32, %arg1: memref<2xi32, #tpu.memory_space<smem>>) -> (i32, i32) {
    %c0_i32 = arith.constant 0 : i32
    %c0_i32_0 = arith.constant 0 : i32
    %c0_i32_1 = arith.constant 0 : i32
    return %c0_i32, %c0_i32_0 : i32, i32
  }
  func.func @transform_2(%arg0: i32, %arg1: memref<2xi32, #tpu.memory_space<smem>>) -> (i32, i32) {
    %c0_i32 = arith.constant 0 : i32
    %c0_i32_0 = arith.constant 0 : i32
    %c0_i32_1 = arith.constant 0 : i32
    return %c0_i32, %c0_i32_0 : i32, i32
  }
}

</mosaic_0001>

<llo_original>
// kernel: preprocess.1
$region0: #{preprocess.1}
  #allocation0 [shape = 'u32[]', space=smem, size = 0x4, offset = 0x4, fixed_abs, tag = 'smem constant byte address 0x4 - core index']
  #allocation1 [shape = 'u32[144,128]{1,0:T(1,128)}', space=vmem, size = 0x12000, scoped, tag = 'internal scratch']
  #allocation2 [shape = 's32[1]{0}', space=sflag, size = 0x4, scoped, tag = 'scoped memory for preprocess.1']
  #allocation3 [shape = 'u8[512]{0}', space=smem, size = 0x200, scoped, tag = 'prefetched SMEM operand 0']
  %s0 = inlined_call_operand.vmem [shape: s32[2], index: 0, kind: input, shape index: {}]
  %s1 = inlined_call_operand.vmem [shape: f32[192,543], index: 1, kind: input, shape index: {}]
  %s2 = inlined_call_operand.vmem [shape: f32[543,128], index: 2, kind: input, shape index: {}]
  %s3 = inlined_call_operand.vmem [shape: f32[192,128], index: 3, kind: output, shape index: {}]
  %s4 = sld [smem:[#allocation0]]
  $region18: #{preprocess.1} parent=0
    _
  %s6 = ssub.s32 1, %s4
  %s7 = scalar_select 0, %s6, %s4
  %s8 = sshll.u32 %s0, 4
  %s9 = int_to_ptr.vmem [resolvable:$true] %s8
  %11 = dma.vmem_to_smem %s9, 16, [#allocation3], [#allocation2]
  %12 = dma.done [#allocation2], 16
  %13 = sfence
  // Predicated region
  $region2: #{preprocess.1} parent=0 // pred_check
    _
  $region3: #{preprocess.1} parent=0 // pred_check_branch
    %15 = sbr.rel (0) target = $region5
  $region4: #{preprocess.1} parent=0 // pred_region
    _
  $region5: #{preprocess.1} parent=0 // pred_fallthru
    _
  // Predicated region
  $region6: #{preprocess.1} parent=0 // pred_check
    _
  $region7: #{preprocess.1} parent=0 // pred_check_branch
    %17 = sbr.rel (0) target = $region9
  $region8: #{preprocess.1} parent=0 // pred_region
    _
  $region9: #{preprocess.1} parent=0 // pred_fallthru
    _
  %s18 = sld [smem:[#allocation3]]
  %p19 = scmp.eq.s32.totalorder %s18, 1
  %s20 = sld [smem:[#allocation3 + $0x1]]
  %v21 = vld [vmem:[%s1] sm:$0xff]
  %v22 = vld [vmem:[%s1 + $0x8] sm:$0xff]
  %v23 = vld [vmem:[%s1 + $0x10] sm:$0xff]
  %v24 = vld [vmem:[%s1 + $0x18] sm:$0xff]
  %v25 = vld [vmem:[%s1 + $0x20] sm:$0xff]
  %v26 = vld [vmem:[%s1 + $0x28] sm:$0xff]
  %v27 = vld [vmem:[%s1 + $0x30] sm:$0xff]
  %v28 = vld [vmem:[%s1 + $0x38] sm:$0xff]
  %v29 = vld [vmem:[%s1 + $0x40] sm:$0xff]
  %v30 = vld [vmem:[%s1 + $0x48] sm:$0xff]
  %v31 = vld [vmem:[%s1 + $0x50] sm:$0xff]
  %v32 = vld [vmem:[%s1 + $0x58] sm:$0xff]
  %v33 = vld [vmem:[%s1 + $0x60] sm:$0xff]
  %v34 = vld [vmem:[%s1 + $0x68] sm:$0xff]
  %v35 = vld [vmem:[%s1 + $0x70] sm:$0xff]
  %v36 = vld [vmem:[%s1 + $0x78] sm:$0xff]
  %v37 = vld [vmem:[%s1 + $0x80] sm:$0xff]
  %v38 = vld [vmem:[%s1 + $0x88] sm:$0xff]
  %v39 = vld [vmem:[%s1 + $0x90] sm:$0xff]
  %v40 = vld [vmem:[%s1 + $0x98] sm:$0xff]
  %v41 = vld [vmem:[%s1 + $0xa0] sm:$0xff]
  %v42 = vld [vmem:[%s1 + $0xa8] sm:$0xff]
  %v43 = vld [vmem:[%s1 + $0xb0] sm:$0xff]
  %v44 = vld [vmem:[%s1 + $0xb8] sm:$0xff]
  %v45 = vld [vmem:[%s1 + $0xc0] sm:$0xff]
  %v46 = vld [vmem:[%s1 + $0xc8] sm:$0xff]
  %v47 = vld [vmem:[%s1 + $0xd0] sm:$0xff]
  %v48 = vld [vmem:[%s1 + $0xd8] sm:$0xff]
  %v49 = vld [vmem:[%s1 + $0xe0] sm:$0xff]
  %v50 = vld [vmem:[%s1 + $0xe8] sm:$0xff]
  %v51 = vld [vmem:[%s1 + $0xf0] sm:$0xff]
  %v52 = vld [vmem:[%s1 + $0xf8] sm:$0xff]
  %v53 = vld [vmem:[%s1 + $0x100] sm:$0xff]
  %v54 = vld [vmem:[%s1 + $0x108] sm:$0xff]
  %v55 = vld [vmem:[%s1 + $0x110] sm:$0xff]
  %v56 = vld [vmem:[%s1 + $0x118] sm:$0xff]
  %v57 = vld [vmem:[%s1 + $0x120] sm:$0xff]
  %v58 = vld [vmem:[%s1 + $0x128] sm:$0xff]
  %v59 = vld [vmem:[%s1 + $0x130] sm:$0xff]
  %v60 = vld [vmem:[%s1 + $0x138] sm:$0xff]
  %v61 = vld [vmem:[%s1 + $0x140] sm:$0xff]
  %v62 = vld [vmem:[%s1 + $0x148] sm:$0xff]
  %v63 = vld [vmem:[%s1 + $0x150] sm:$0xff]
  %v64 = vld [vmem:[%s1 + $0x158] sm:$0xff]
  %v65 = vld [vmem:[%s1 + $0x160] sm:$0xff]
  %v66 = vld [vmem:[%s1 + $0x168] sm:$0xff]
  %v67 = vld [vmem:[%s1 + $0x170] sm:$0xff]
  %v68 = vld [vmem:[%s1 + $0x178] sm:$0xff]
  %v69 = vld [vmem:[%s1 + $0x180] sm:$0xff]
  %v70 = vld [vmem:[%s1 + $0x188] sm:$0xff]
  %v71 = vld [vmem:[%s1 + $0x190] sm:$0xff]
  %v72 = vld [vmem:[%s1 + $0x198] sm:$0xff]
  %v73 = vld [vmem:[%s1 + $0x1a0] sm:$0xff]
  %v74 = vld [vmem:[%s1 + $0x1a8] sm:$0xff]
  %v75 = vld [vmem:[%s1 + $0x1b0] sm:$0xff]
  %v76 = vld [vmem:[%s1 + $0x1b8] sm:$0xff]
  %v77 = vld [vmem:[%s1 + $0x1c0] sm:$0xff]
  %v78 = vld [vmem:[%s1 + $0x1c8] sm:$0xff]
  %v79 = vld [vmem:[%s1 + $0x1d0] sm:$0xff]
  %v80 = vld [vmem:[%s1 + $0x1d8] sm:$0xff]
  %v81 = vld [vmem:[%s1 + $0x1e0] sm:$0xff]
  %v82 = vld [vmem:[%s1 + $0x1e8] sm:$0xff]
  %v83 = vld [vmem:[%s1 + $0x1f0] sm:$0xff]
  %v84 = vld [vmem:[%s1 + $0x1f8] sm:$0xff]
  %v85 = vld [vmem:[%s1 + $0x200] sm:$0xff]
  %v86 = vld [vmem:[%s1 + $0x208] sm:$0xff]
  %v87 = vld [vmem:[%s1 + $0x210] sm:$0xff]
  %v88 = vld [vmem:[%s1 + $0x218] sm:$0xff]
  %v89 = vld [vmem:[%s1 + $0x220] sm:$0xff]
  %v90 = vld [vmem:[%s1 + $0x228] sm:$0xff]
  %v91 = vld [vmem:[%s1 + $0x230] sm:$0xff]
  %v92 = vld [vmem:[%s1 + $0x238] sm:$0xff]
  %v93 = vld [vmem:[%s1 + $0x240] sm:$0xff]
  %v94 = vld [vmem:[%s1 + $0x248] sm:$0xff]
  %v95 = vld [vmem:[%s1 + $0x250] sm:$0xff]
  %v96 = vld [vmem:[%s1 + $0x258] sm:$0xff]
  %v97 = vld [vmem:[%s1 + $0x260] sm:$0xff]
  %v98 = vld [vmem:[%s1 + $0x268] sm:$0xff]
  %v99 = vld [vmem:[%s1 + $0x270] sm:$0xff]
  %v100 = vld [vmem:[%s1 + $0x278] sm:$0xff]
  %v101 = vld [vmem:[%s1 + $0x280] sm:$0xff]
  %v102 = vld [vmem:[%s1 + $0x288] sm:$0xff]
  %v103 = vld [vmem:[%s1 + $0x290] sm:$0xff]
  %v104 = vld [vmem:[%s1 + $0x298] sm:$0xff]
  %v105 = vld [vmem:[%s1 + $0x2a0] sm:$0xff]
  %v106 = vld [vmem:[%s1 + $0x2a8] sm:$0xff]
  %v107 = vld [vmem:[%s1 + $0x2b0] sm:$0xff]
  %v108 = vld [vmem:[%s1 + $0x2b8] sm:$0xff]
  %v109 = vld [vmem:[%s1 + $0x2c0] sm:$0xff]
  %v110 = vld [vmem:[%s1 + $0x2c8] sm:$0xff]
  %v111 = vld [vmem:[%s1 + $0x2d0] sm:$0xff]
  %v112 = vld [vmem:[%s1 + $0x2d8] sm:$0xff]
  %v113 = vld [vmem:[%s1 + $0x2e0] sm:$0xff]
  %v114 = vld [vmem:[%s1 + $0x2e8] sm:$0xff]
  %v115 = vld [vmem:[%s1 + $0x2f0] sm:$0xff]
  %v116 = vld [vmem:[%s1 + $0x2f8] sm:$0xff]
  %v117 = vld [vmem:[%s1 + $0x300] sm:$0xff]
  %v118 = vld [vmem:[%s1 + $0x308] sm:$0xff]
  %v119 = vld [vmem:[%s1 + $0x310] sm:$0xff]
  %v120 = vld [vmem:[%s1 + $0x318] sm:$0xff]
  %v121 = vld [vmem:[%s1 + $0x320] sm:$0xff]
  %v122 = vld [vmem:[%s1 + $0x328] sm:$0xff]
  %v123 = vld [vmem:[%s1 + $0x330] sm:$0xff]
  %v124 = vld [vmem:[%s1 + $0x338] sm:$0xff]
  %v125 = vld [vmem:[%s1 + $0x340] sm:$0xff]
  %v126 = vld [vmem:[%s1 + $0x348] sm:$0xff]
  %v127 = vld [vmem:[%s1 + $0x350] sm:$0xff]
  %v128 = vld [vmem:[%s1 + $0x358] sm:$0xff]
  %v129 = vld [vmem:[%s1 + $0x360] sm:$0xff]
  %v130 = vld [vmem:[%s1 + $0x368] sm:$0xff]
  %v131 = vld [vmem:[%s1 + $0x370] sm:$0xff]
  %v132 = vld [vmem:[%s1 + $0x378] sm:$0xff]
  %v133 = vld [vmem:[%s1 + $0x380] sm:$0xff]
  %v134 = vld [vmem:[%s1 + $0x388] sm:$0xff]
  %v135 = vld [vmem:[%s1 + $0x390] sm:$0xff]
  %v136 = vld [vmem:[%s1 + $0x398] sm:$0xff]
  %v137 = vld [vmem:[%s1 + $0x3a0] sm:$0xff]
  %v138 = vld [vmem:[%s1 + $0x3a8] sm:$0xff]
  %v139 = vld [vmem:[%s1 + $0x3b0] sm:$0xff]
  %v140 = vld [vmem:[%s1 + $0x3b8] sm:$0xff]
  %vm141 = vcmp.ne.f32.partialorder %v21, %v21
  %vm142 = vcmp.ne.f32.partialorder %v22, %v22
  %vm143 = vcmp.ne.f32.partialorder %v23, %v23
  %vm144 = vcmp.ne.f32.partialorder %v24, %v24
  %vm145 = vcmp.ne.f32.partialorder %v25, %v25
  %vm146 = vcmp.ne.f32.partialorder %v26, %v26
  %vm147 = vcmp.ne.f32.partialorder %v27, %v27
  %vm148 = vcmp.ne.f32.partialorder %v28, %v28
  %vm149 = vcmp.ne.f32.partialorder %v29, %v29
  %vm150 = vcmp.ne.f32.partialorder %v30, %v30
  %vm151 = vcmp.ne.f32.partialorder %v31, %v31
  %vm152 = vcmp.ne.f32.partialorder %v32, %v32
  %vm153 = vcmp.ne.f32.partialorder %v33, %v33
  %vm154 = vcmp.ne.f32.partialorder %v34, %v34
  %vm155 = vcmp.ne.f32.partialorder %v35, %v35
  %vm156 = vcmp.ne.f32.partialorder %v36, %v36
  %vm157 = vcmp.ne.f32.partialorder %v37, %v37
  %vm158 = vcmp.ne.f32.partialorder %v38, %v38
  %vm159 = vcmp.ne.f32.partialorder %v39, %v39
  %vm160 = vcmp.ne.f32.partialorder %v40, %v40
  %vm161 = vcmp.ne.f32.partialorder %v41, %v41
  %vm162 = vcmp.ne.f32.partialorder %v42, %v42
  %vm163 = vcmp.ne.f32.partialorder %v43, %v43
  %vm164 = vcmp.ne.f32.partialorder %v44, %v44
  %vm165 = vcmp.ne.f32.partialorder %v45, %v45
  %vm166 = vcmp.ne.f32.partialorder %v46, %v46
  %vm167 = vcmp.ne.f32.partialorder %v47, %v47
  %vm168 = vcmp.ne.f32.partialorder %v48, %v48
  %vm169 = vcmp.ne.f32.partialorder %v49, %v49
  %vm170 = vcmp.ne.f32.partialorder %v50, %v50
  %vm171 = vcmp.ne.f32.partialorder %v51, %v51
  %vm172 = vcmp.ne.f32.partialorder %v52, %v52
  %vm173 = vcmp.ne.f32.partialorder %v53, %v53
  %vm174 = vcmp.ne.f32.partialorder %v54, %v54
  %vm175 = vcmp.ne.f32.partialorder %v55, %v55
  %vm176 = vcmp.ne.f32.partialorder %v56, %v56
  %vm177 = vcmp.ne.f32.partialorder %v57, %v57
  %vm178 = vcmp.ne.f32.partialorder %v58, %v58
  %vm179 = vcmp.ne.f32.partialorder %v59, %v59
  %vm180 = vcmp.ne.f32.partialorder %v60, %v60
  %vm181 = vcmp.ne.f32.partialorder %v61, %v61
  %vm182 = vcmp.ne.f32.partialorder %v62, %v62
  %vm183 = vcmp.ne.f32.partialorder %v63, %v63
  %vm184 = vcmp.ne.f32.partialorder %v64, %v64
  %vm185 = vcmp.ne.f32.partialorder %v65, %v65
  %vm186 = vcmp.ne.f32.partialorder %v66, %v66
  %vm187 = vcmp.ne.f32.partialorder %v67, %v67
  %vm188 = vcmp.ne.f32.partialorder %v68, %v68
  %vm189 = vcmp.ne.f32.partialorder %v69, %v69
  %vm190 = vcmp.ne.f32.partialorder %v70, %v70
  %vm191 = vcmp.ne.f32.partialorder %v71, %v71
  %vm192 = vcmp.ne.f32.partialorder %v72, %v72
  %vm193 = vcmp.ne.f32.partialorder %v73, %v73
  %vm194 = vcmp.ne.f32.partialorder %v74, %v74
  %vm195 = vcmp.ne.f32.partialorder %v75, %v75
  %vm196 = vcmp.ne.f32.partialorder %v76, %v76
  %vm197 = vcmp.ne.f32.partialorder %v77, %v77
  %vm198 = vcmp.ne.f32.partialorder %v78, %v78
  %vm199 = vcmp.ne.f32.partialorder %v79, %v79
  %vm200 = vcmp.ne.f32.partialorder %v80, %v80
  %vm201 = vcmp.ne.f32.partialorder %v81, %v81
  %vm202 = vcmp.ne.f32.partialorder %v82, %v82
  %vm203 = vcmp.ne.f32.partialorder %v83, %v83
  %vm204 = vcmp.ne.f32.partialorder %v84, %v84
  %vm205 = vcmp.ne.f32.partialorder %v85, %v85
  %vm206 = vcmp.ne.f32.partialorder %v86, %v86
  %vm207 = vcmp.ne.f32.partialorder %v87, %v87
  %vm208 = vcmp.ne.f32.partialorder %v88, %v88
  %vm209 = vcmp.ne.f32.partialorder %v89, %v89
  %vm210 = vcmp.ne.f32.partialorder %v90, %v90
  %vm211 = vcmp.ne.f32.partialorder %v91, %v91
  %vm212 = vcmp.ne.f32.partialorder %v92, %v92
  %vm213 = vcmp.ne.f32.partialorder %v93, %v93
  %vm214 = vcmp.ne.f32.partialorder %v94, %v94
  %vm215 = vcmp.ne.f32.partialorder %v95, %v95
  %vm216 = vcmp.ne.f32.partialorder %v96, %v96
  %vm217 = vcmp.ne.f32.partialorder %v97, %v97
  %vm218 = vcmp.ne.f32.partialorder %v98, %v98
  %vm219 = vcmp.ne.f32.partialorder %v99, %v99
  %vm220 = vcmp.ne.f32.partialorder %v100, %v100
  %vm221 = vcmp.ne.f32.partialorder %v101, %v101
  %vm222 = vcmp.ne.f32.partialorder %v102, %v102
  %vm223 = vcmp.ne.f32.partialorder %v103, %v103
  %vm224 = vcmp.ne.f32.partialorder %v104, %v104
  %vm225 = vcmp.ne.f32.partialorder %v105, %v105
  %vm226 = vcmp.ne.f32.partialorder %v106, %v106
  %vm227 = vcmp.ne.f32.partialorder %v107, %v107
  %vm228 = vcmp.ne.f32.partialorder %v108, %v108
  %vm229 = vcmp.ne.f32.partialorder %v109, %v109
  %vm230 = vcmp.ne.f32.partialorder %v110, %v110
  %vm231 = vcmp.ne.f32.partialorder %v111, %v111
  %vm232 = vcmp.ne.f32.partialorder %v112, %v112
  %vm233 = vcmp.ne.f32.partialorder %v113, %v113
  %vm234 = vcmp.ne.f32.partialorder %v114, %v114
  %vm235 = vcmp.ne.f32.partialorder %v115, %v115
  %vm236 = vcmp.ne.f32.partialorder %v116, %v116
  %vm237 = vcmp.ne.f32.partialorder %v117, %v117
  %vm238 = vcmp.ne.f32.partialorder %v118, %v118
  %vm239 = vcmp.ne.f32.partialorder %v119, %v119
  %vm240 = vcmp.ne.f32.partialorder %v120, %v120
  %vm241 = vcmp.ne.f32.partialorder %v121, %v121
  %vm242 = vcmp.ne.f32.partialorder %v122, %v122
  %vm243 = vcmp.ne.f32.partialorder %v123, %v123
  %vm244 = vcmp.ne.f32.partialorder %v124, %v124
  %vm245 = vcmp.ne.f32.partialorder %v125, %v125
  %vm246 = vcmp.ne.f32.partialorder %v126, %v126
  %vm247 = vcmp.ne.f32.partialorder %v127, %v127
  %vm248 = vcmp.ne.f32.partialorder %v128, %v128
  %vm249 = vcmp.ne.f32.partialorder %v129, %v129
  %vm250 = vcmp.ne.f32.partialorder %v130, %v130
  %vm251 = vcmp.ne.f32.partialorder %v131, %v131
  %vm252 = vcmp.ne.f32.partialorder %v132, %v132
  %vm253 = vcmp.ne.f32.partialorder %v133, %v133
  %vm254 = vcmp.ne.f32.partialorder %v134, %v134
  %vm255 = vcmp.ne.f32.partialorder %v135, %v135
  %vm256 = vcmp.ne.f32.partialorder %v136, %v136
  %vm257 = vcmp.ne.f32.partialorder %v137, %v137
  %vm258 = vcmp.ne.f32.partialorder %v138, %v138
  %vm259 = vcmp.ne.f32.partialorder %v139, %v139
  %vm260 = vcmp.ne.f32.partialorder %v140, %v140
  %v261 = vsel %vm141, 0.0, %v21
  %v262 = vsel %vm142, 0.0, %v22
  %v263 = vsel %vm143, 0.0, %v23
  %v264 = vsel %vm144, 0.0, %v24
  %v265 = vsel %vm145, 0.0, %v25
  %v266 = vsel %vm146, 0.0, %v26
  %v267 = vsel %vm147, 0.0, %v27
  %v268 = vsel %vm148, 0.0, %v28
  %v269 = vsel %vm149, 0.0, %v29
  %v270 = vsel %vm150, 0.0, %v30
  %v271 = vsel %vm151, 0.0, %v31
  %v272 = vsel %vm152, 0.0, %v32
  %v273 = vsel %vm153, 0.0, %v33
  %v274 = vsel %vm154, 0.0, %v34
  %v275 = vsel %vm155, 0.0, %v35
  %v276 = vsel %vm156, 0.0, %v36
  %v277 = vsel %vm157, 0.0, %v37
  %v278 = vsel %vm158, 0.0, %v38
  %v279 = vsel %vm159, 0.0, %v39
  %v280 = vsel %vm160, 0.0, %v40
  %v281 = vsel %vm161, 0.0, %v41
  %v282 = vsel %vm162, 0.0, %v42
  %v283 = vsel %vm163, 0.0, %v43
  %v284 = vsel %vm164, 0.0, %v44
  %v285 = vsel %vm165, 0.0, %v45
  %v286 = vsel %vm166, 0.0, %v46
  %v287 = vsel %vm167, 0.0, %v47
  %v288 = vsel %vm168, 0.0, %v48
  %v289 = vsel %vm169, 0.0, %v49
  %v290 = vsel %vm170, 0.0, %v50
  %v291 = vsel %vm171, 0.0, %v51
  %v292 = vsel %vm172, 0.0, %v52
  %v293 = vsel %vm173, 0.0, %v53
  %v294 = vsel %vm174, 0.0, %v54
  %v295 = vsel %vm175, 0.0, %v55
  %v296 = vsel %vm176, 0.0, %v56
  %v297 = vsel %vm177, 0.0, %v57
  %v298 = vsel %vm178, 0.0, %v58
  %v299 = vsel %vm179, 0.0, %v59
  %v300 = vsel %vm180, 0.0, %v60
  %v301 = vsel %vm181, 0.0, %v61
  %v302 = vsel %vm182, 0.0, %v62
  %v303 = vsel %vm183, 0.0, %v63
  %v304 = vsel %vm184, 0.0, %v64
  %v305 = vsel %vm185, 0.0, %v65
  %v306 = vsel %vm186, 0.0, %v66
  %v307 = vsel %vm187, 0.0, %v67
  %v308 = vsel %vm188, 0.0, %v68
  %v309 = vsel %vm189, 0.0, %v69
  %v310 = vsel %vm190, 0.0, %v70
  %v311 = vsel %vm191, 0.0, %v71
  %v312 = vsel %vm192, 0.0, %v72
  %v313 = vsel %vm193, 0.0, %v73
  %v314 = vsel %vm194, 0.0, %v74
  %v315 = vsel %vm195, 0.0, %v75
  %v316 = vsel %vm196, 0.0, %v76
  %v317 = vsel %vm197, 0.0, %v77
  %v318 = vsel %vm198, 0.0, %v78
  %v319 = vsel %vm199, 0.0, %v79
  %v320 = vsel %vm200, 0.0, %v80
  %v321 = vsel %vm201, 0.0, %v81
  %v322 = vsel %vm202, 0.0, %v82
  %v323 = vsel %vm203, 0.0, %v83
  %v324 = vsel %vm204, 0.0, %v84
  %v325 = vsel %vm205, 0.0, %v85
  %v326 = vsel %vm206, 0.0, %v86
  %v327 = vsel %vm207, 0.0, %v87
  %v328 = vsel %vm208, 0.0, %v88
  %v329 = vsel %vm209, 0.0, %v89
  %v330 = vsel %vm210, 0.0, %v90
  %v331 = vsel %vm211, 0.0, %v91
  %v332 = vsel %vm212, 0.0, %v92
  %v333 = vsel %vm213, 0.0, %v93
  %v334 = vsel %vm214, 0.0, %v94
  %v335 = vsel %vm215, 0.0, %v95
  %v336 = vsel %vm216, 0.0, %v96
  %v337 = vsel %vm217, 0.0, %v97
  %v338 = vsel %vm218, 0.0, %v98
  %v339 = vsel %vm219, 0.0, %v99
  %v340 = vsel %vm220, 0.0, %v100
  %v341 = vsel %vm221, 0.0, %v101
  %v342 = vsel %vm222, 0.0, %v102
  %v343 = vsel %vm223, 0.0, %v103
  %v344 = vsel %vm224, 0.0, %v104
  %v345 = vsel %vm225, 0.0, %v105
  %v346 = vsel %vm226, 0.0, %v106
  %v347 = vsel %vm227, 0.0, %v107
  %v348 = vsel %vm228, 0.0, %v108
  %v349 = vsel %vm229, 0.0, %v109
  %v350 = vsel %vm230, 0.0, %v110
  %v351 = vsel %vm231, 0.0, %v111
  %v352 = vsel %vm232, 0.0, %v112
  %v353 = vsel %vm233, 0.0, %v113
  %v354 = vsel %vm234, 0.0, %v114
  %v355 = vsel %vm235, 0.0, %v115
  %v356 = vsel %vm236, 0.0, %v116
  %v357 = vsel %vm237, 0.0, %v117
  %v358 = vsel %vm238, 0.0, %v118
  %v359 = vsel %vm239, 0.0, %v119
  %v360 = vsel %vm240, 0.0, %v120
  %v361 = vsel %vm241, 0.0, %v121
  %v362 = vsel %vm242, 0.0, %v122
  %v363 = vsel %vm243, 0.0, %v123
  %v364 = vsel %vm244, 0.0, %v124
  %v365 = vsel %vm245, 0.0, %v125
  %v366 = vsel %vm246, 0.0, %v126
  %v367 = vsel %vm247, 0.0, %v127
  %v368 = vsel %vm248, 0.0, %v128
  %v369 = vsel %vm249, 0.0, %v129
  %v370 = vsel %vm250, 0.0, %v130
  %v371 = vsel %vm251, 0.0, %v131
  %v372 = vsel %vm252, 0.0, %v132
  %v373 = vsel %vm253, 0.0, %v133
  %v374 = vsel %vm254, 0.0, %v134
  %v375 = vsel %vm255, 0.0, %v135
  %v376 = vsel %vm256, 0.0, %v136
  %v377 = vsel %vm257, 0.0, %v137
  %v378 = vsel %vm258, 0.0, %v138
  %v379 = vsel %vm259, 0.0, %v139
  %v380 = vsel %vm260, 0.0, %v140
  %v381 = vld [vmem:[%s2] sm:$0xff]
  %v382 = vld [vmem:[%s2 + $0x8] sm:$0xff]
  %v383 = vld [vmem:[%s2 + $0x10] sm:$0xff]
  %v384 = vld [vmem:[%s2 + $0x18] sm:$0xff]
  %v385 = vld [vmem:[%s2 + $0x20] sm:$0xff]
  %v386 = vld [vmem:[%s2 + $0x28] sm:$0xff]
  %v387 = vld [vmem:[%s2 + $0x30] sm:$0xff]
  %v388 = vld [vmem:[%s2 + $0x38] sm:$0xff]
  %v389 = vld [vmem:[%s2 + $0x40] sm:$0xff]
  %v390 = vld [vmem:[%s2 + $0x48] sm:$0xff]
  %v391 = vld [vmem:[%s2 + $0x50] sm:$0xff]
  %v392 = vld [vmem:[%s2 + $0x58] sm:$0xff]
  %v393 = vld [vmem:[%s2 + $0x60] sm:$0xff]
  %v394 = vld [vmem:[%s2 + $0x68] sm:$0xff]
  %v395 = vld [vmem:[%s2 + $0x70] sm:$0xff]
  %v396 = vld [vmem:[%s2 + $0x78] sm:$0xff]
  %v397 = vld [vmem:[%s2 + $0x80] sm:$0xff]
  %v398 = vld [vmem:[%s2 + $0x88] sm:$0xff]
  %v399 = vld [vmem:[%s2 + $0x90] sm:$0xff]
  %v400 = vld [vmem:[%s2 + $0x98] sm:$0xff]
  %v401 = vld [vmem:[%s2 + $0xa0] sm:$0xff]
  %v402 = vld [vmem:[%s2 + $0xa8] sm:$0xff]
  %v403 = vld [vmem:[%s2 + $0xb0] sm:$0xff]
  %v404 = vld [vmem:[%s2 + $0xb8] sm:$0xff]
  %v405 = vld [vmem:[%s2 + $0xc0] sm:$0xff]
  %v406 = vld [vmem:[%s2 + $0xc8] sm:$0xff]
  %v407 = vld [vmem:[%s2 + $0xd0] sm:$0xff]
  %v408 = vld [vmem:[%s2 + $0xd8] sm:$0xff]
  %v409 = vld [vmem:[%s2 + $0xe0] sm:$0xff]
  %v410 = vld [vmem:[%s2 + $0xe8] sm:$0xff]
  %v411 = vld [vmem:[%s2 + $0xf0] sm:$0xff]
  %v412 = vld [vmem:[%s2 + $0xf8] sm:$0xff]
  %v413 = vld [vmem:[%s2 + $0x100] sm:$0xff]
  %v414 = vld [vmem:[%s2 + $0x108] sm:$0xff]
  %v415 = vld [vmem:[%s2 + $0x110] sm:$0xff]
  %v416 = vld [vmem:[%s2 + $0x118] sm:$0xff]
  %v417 = vld [vmem:[%s2 + $0x120] sm:$0xff]
  %v418 = vld [vmem:[%s2 + $0x128] sm:$0xff]
  %v419 = vld [vmem:[%s2 + $0x130] sm:$0xff]
  %v420 = vld [vmem:[%s2 + $0x138] sm:$0xff]
  %v421 = vld [vmem:[%s2 + $0x140] sm:$0xff]
  %v422 = vld [vmem:[%s2 + $0x148] sm:$0xff]
  %v423 = vld [vmem:[%s2 + $0x150] sm:$0xff]
  %v424 = vld [vmem:[%s2 + $0x158] sm:$0xff]
  %v425 = vld [vmem:[%s2 + $0x160] sm:$0xff]
  %v426 = vld [vmem:[%s2 + $0x168] sm:$0xff]
  %v427 = vld [vmem:[%s2 + $0x170] sm:$0xff]
  %v428 = vld [vmem:[%s2 + $0x178] sm:$0xff]
  %v429 = vld [vmem:[%s2 + $0x180] sm:$0xff]
  %v430 = vld [vmem:[%s2 + $0x188] sm:$0xff]
  %v431 = vld [vmem:[%s2 + $0x190] sm:$0xff]
  %v432 = vld [vmem:[%s2 + $0x198] sm:$0xff]
  %v433 = vld [vmem:[%s2 + $0x1a0] sm:$0xff]
  %v434 = vld [vmem:[%s2 + $0x1a8] sm:$0xff]
  %v435 = vld [vmem:[%s2 + $0x1b0] sm:$0xff]
  %v436 = vld [vmem:[%s2 + $0x1b8] sm:$0xff]
  %v437 = vld [vmem:[%s2 + $0x1c0] sm:$0xff]
  %v438 = vld [vmem:[%s2 + $0x1c8] sm:$0xff]
  %v439 = vld [vmem:[%s2 + $0x1d0] sm:$0xff]
  %v440 = vld [vmem:[%s2 + $0x1d8] sm:$0xff]
  %v441 = vld [vmem:[%s2 + $0x1e0] sm:$0xff]
  %v442 = vld [vmem:[%s2 + $0x1e8] sm:$0xff]
  %v443 = vld [vmem:[%s2 + $0x1f0] sm:$0xff]
  %v444 = vld [vmem:[%s2 + $0x1f8] sm:$0xff]
  %v445 = vld [vmem:[%s2 + $0x200] sm:$0xff]
  %v446 = vld [vmem:[%s2 + $0x208] sm:$0xff]
  %v447 = vld [vmem:[%s2 + $0x210] sm:$0xff]
  %v448 = vld [vmem:[%s2 + $0x218] sm:$0x7f]
  %vm449 = vcmask 252928
  %v451 = vsel %vm449, %v265, 0
  %v454 = vsel %vm449, %v270, 0
  %v457 = vsel %vm449, %v275, 0
  %v460 = vsel %vm449, %v280, 0
  %v463 = vsel %vm449, %v285, 0
  %v466 = vsel %vm449, %v290, 0
  %v469 = vsel %vm449, %v295, 0
  %v472 = vsel %vm449, %v300, 0
  %v475 = vsel %vm449, %v305, 0
  %v478 = vsel %vm449, %v310, 0
  %v481 = vsel %vm449, %v315, 0
  %v484 = vsel %vm449, %v320, 0
  %v487 = vsel %vm449, %v325, 0
  %v490 = vsel %vm449, %v330, 0
  %v493 = vsel %vm449, %v335, 0
  %v496 = vsel %vm449, %v340, 0
  %v499 = vsel %vm449, %v345, 0
  %v502 = vsel %vm449, %v350, 0
  %v505 = vsel %vm449, %v355, 0
  %v508 = vsel %vm449, %v360, 0
  %v511 = vsel %vm449, %v365, 0
  %v514 = vsel %vm449, %v370, 0
  %v517 = vsel %vm449, %v375, 0
  %v520 = vsel %vm449, %v380, 0
  %vm522 = vcmask 1046528
  %v524 = vsel %vm522, %v448, 0
  %526 = vmatprep.subr.mxu0 0.0
  %527 = vmatpush1.msra.mxu0 %v381
  %528 = vmatprep.subr.mxu0 0.0
  %529 = vmatpush1.msra.mxu0 %v382
  %530 = vmatprep.subr.mxu0 0.0
  %531 = vmatpush1.msra.mxu0 %v383
  %532 = vmatprep.subr.mxu0 0.0
  %533 = vmatpush1.msra.mxu0 %v384
  %534 = vmatprep.subr.mxu0 0.0
  %535 = vmatpush1.msra.mxu0 %v385
  %536 = vmatprep.subr.mxu0 0.0
  %537 = vmatpush1.msra.mxu0 %v386
  %538 = vmatprep.subr.mxu0 0.0
  %539 = vmatpush1.msra.mxu0 %v387
  %540 = vmatprep.subr.mxu0 0.0
  %541 = vmatpush1.msra.mxu0 %v388
  %542 = vmatprep.subr.mxu0 0.0
  %543 = vmatpush1.msra.mxu0 %v389
  %544 = vmatprep.subr.mxu0 0.0
  %545 = vmatpush1.msra.mxu0 %v390
  %546 = vmatprep.subr.mxu0 0.0
  %547 = vmatpush1.msra.mxu0 %v391
  %548 = vmatprep.subr.mxu0 0.0
  %549 = vmatpush1.msra.mxu0 %v392
  %550 = vmatprep.subr.mxu0 0.0
  %551 = vmatpush1.msra.mxu0 %v393
  %552 = vmatprep.subr.mxu0 0.0
  %553 = vmatpush1.msra.mxu0 %v394
  %554 = vmatprep.subr.mxu0 0.0
  %555 = vmatpush1.msra.mxu0 %v395
  %556 = vmatprep.subr.mxu0 0.0
  %557 = vmatpush1.msra.mxu0 %v396
  %558 = vmatprep.subr.mxu0 0.0
  %559 = vmatpush1.msra.mxu0 %v397
  %560 = vmatprep.subr.mxu0 0.0
  %561 = vmatpush1.msra.mxu0 %v398
  %562 = vmatprep.subr.mxu0 0.0
  %563 = vmatpush1.msra.mxu0 %v399
  %564 = vmatprep.subr.mxu0 0.0
  %565 = vmatpush1.msra.mxu0 %v400
  %566 = vmatprep.subr.mxu0 0.0
  %567 = vmatpush1.msra.mxu0 %v401
  %568 = vmatprep.subr.mxu0 0.0
  %569 = vmatpush1.msra.mxu0 %v402
  %570 = vmatprep.subr.mxu0 0.0
  %571 = vmatpush1.msra.mxu0 %v403
  %572 = vmatprep.subr.mxu0 0.0
  %573 = vmatpush1.msra.mxu0 %v404
  %574 = vmatprep.subr.mxu0 0.0
  %575 = vmatpush1.msra.mxu0 %v405
  %576 = vmatprep.subr.mxu0 0.0
  %577 = vmatpush1.msra.mxu0 %v406
  %578 = vmatprep.subr.mxu0 0.0
  %579 = vmatpush1.msra.mxu0 %v407
  %580 = vmatprep.subr.mxu0 0.0
  %581 = vmatpush1.msra.mxu0 %v408
  %582 = vmatprep.subr.mxu0 0.0
  %583 = vmatpush1.msra.mxu0 %v409
  %584 = vmatprep.subr.mxu0 0.0
  %585 = vmatpush1.msra.mxu0 %v410
  %586 = vmatprep.subr.mxu0 0.0
  %587 = vmatpush1.msra.mxu0 %v411
  %588 = vmatprep.subr.mxu0 0.0
  %589 = vmatpush1.msra.mxu0 %v412
  %590 = vmatprep.mubr.f32.mxu0 %v262
  %591 = vmatmul.mubr.f32.gmra.mrb[0].mxu0 %v261
  %v592 = vpop.f32.mrb[0].mxu0
  %v593 = vadd.f32 0.0, %v592
  %v594 = vpop.f32.mrb[0].mxu0
  %595 = vmatprep.mubr.f32.mxu0 %v267
  %596 = vmatmul.mubr.f32.gmra.mrb[0].mxu0 %v266
  %v597 = vpop.f32.mrb[0].mxu0
  %v598 = vadd.f32 0.0, %v597
  %v599 = vpop.f32.mrb[0].mxu0
  %600 = vmatprep.mubr.f32.mxu0 %v272
  %601 = vmatmul.mubr.f32.gmra.mrb[0].mxu0 %v271
  %v602 = vpop.f32.mrb[0].mxu0
  %v603 = vadd.f32 0.0, %v602
  %v604 = vpop.f32.mrb[0].mxu0
  %605 = vmatprep.mubr.f32.mxu0 %v277
  %606 = vmatmul.mubr.f32.gmra.mrb[0].mxu0 %v276
  %v607 = vpop.f32.mrb[0].mxu0
  %v608 = vadd.f32 0.0, %v607
  %v609 = vpop.f32.mrb[0].mxu0
  %610 = vmatprep.mubr.f32.mxu0 %v282
  %611 = vmatmul.mubr.f32.gmra.mrb[0].mxu0 %v281
  %v612 = vpop.f32.mrb[0].mxu0
  %v613 = vadd.f32 0.0, %v612
  %v614 = vpop.f32.mrb[0].mxu0
  %615 = vmatprep.mubr.f32.mxu0 %v287
  %616 = vmatmul.mubr.f32.gmra.mrb[0].mxu0 %v286
  %v617 = vpop.f32.mrb[0].mxu0
  %v618 = vadd.f32 0.0, %v617
  %v619 = vpop.f32.mrb[0].mxu0
  %620 = vmatprep.mubr.f32.mxu0 %v292
  %621 = vmatmul.mubr.f32.gmra.mrb[0].mxu0 %v291
  %v622 = vpop.f32.mrb[0].mxu0
  %v623 = vadd.f32 0.0, %v622
  %v624 = vpop.f32.mrb[0].mxu0
  %625 = vmatprep.mubr.f32.mxu0 %v297
  %626 = vmatmul.mubr.f32.gmra.mrb[0].mxu0 %v296
  %v627 = vpop.f32.mrb[0].mxu0
  %v628 = vadd.f32 0.0, %v627
  %v629 = vpop.f32.mrb[0].mxu0
  %630 = vmatprep.mubr.f32.mxu0 %v302
  %631 = vmatmul.mubr.f32.gmra.mrb[0].mxu0 %v301
  %v632 = vpop.f32.mrb[0].mxu0
  %v633 = vadd.f32 0.0, %v632
  %v634 = vpop.f32.mrb[0].mxu0
  %635 = vmatprep.mubr.f32.mxu0 %v307
  %636 = vmatmul.mubr.f32.gmra.mrb[0].mxu0 %v306
  %v637 = vpop.f32.mrb[0].mxu0
  %v638 = vadd.f32 0.0, %v637
  %v639 = vpop.f32.mrb[0].mxu0
  %640 = vmatprep.mubr.f32.mxu0 %v312
  %641 = vmatmul.mubr.f32.gmra.mrb[0].mxu0 %v311
  %v642 = vpop.f32.mrb[0].mxu0
  %v643 = vadd.f32 0.0, %v642
  %v644 = vpop.f32.mrb[0].mxu0
  %645 = vmatprep.mubr.f32.mxu0 %v317
  %646 = vmatmul.mubr.f32.gmra.mrb[0].mxu0 %v316
  %v647 = vpop.f32.mrb[0].mxu0
  %v648 = vadd.f32 0.0, %v647
  %v649 = vpop.f32.mrb[0].mxu0
  %650 = vmatprep.mubr.f32.mxu0 %v322
  %651 = vmatmul.mubr.f32.gmra.mrb[0].mxu0 %v321
  %v652 = vpop.f32.mrb[0].mxu0
  %v653 = vadd.f32 0.0, %v652
  %v654 = vpop.f32.mrb[0].mxu0
  %655 = vmatprep.mubr.f32.mxu0 %v327
  %656 = vmatmul.mubr.f32.gmra.mrb[0].mxu0 %v326
  %v657 = vpop.f32.mrb[0].mxu0
  %v658 = vadd.f32 0.0, %v657
  %v659 = vpop.f32.mrb[0].mxu0
  %660 = vmatprep.mubr.f32.mxu0 %v332
  %661 = vmatmul.mubr.f32.gmra.mrb[0].mxu0 %v331
  %v662 = vpop.f32.mrb[0].mxu0
  %v663 = vadd.f32 0.0, %v662
  %v664 = vpop.f32.mrb[0].mxu0
  %665 = vmatprep.mubr.f32.mxu0 %v337
  %666 = vmatmul.mubr.f32.gmra.mrb[0].mxu0 %v336
  %v667 = vpop.f32.mrb[0].mxu0
  %v668 = vadd.f32 0.0, %v667
  %v669 = vpop.f32.mrb[0].mxu0
  %670 = vmatprep.mubr.f32.mxu0 %v342
  %671 = vmatmul.mubr.f32.gmra.mrb[0].mxu0 %v341
  %v672 = vpop.f32.mrb[0].mxu0
  %v673 = vadd.f32 0.0, %v672
  %v674 = vpop.f32.mrb[0].mxu0
  %675 = vmatprep.mubr.f32.mxu0 %v347
  %676 = vmatmul.mubr.f32.gmra.mrb[0].mxu0 %v346
  %v677 = vpop.f32.mrb[0].mxu0
  %v678 = vadd.f32 0.0, %v677
  %v679 = vpop.f32.mrb[0].mxu0
  %680 = vmatprep.mubr.f32.mxu0 %v352
  %681 = vmatmul.mubr.f32.gmra.mrb[0].mxu0 %v351
  %v682 = vpop.f32.mrb[0].mxu0
  %v683 = vadd.f32 0.0, %v682
  %v684 = vpop.f32.mrb[0].mxu0
  %685 = vmatprep.mubr.f32.mxu0 %v357
  %686 = vmatmul.mubr.f32.gmra.mrb[0].mxu0 %v356
  %v687 = vpop.f32.mrb[0].mxu0
  %v688 = vadd.f32 0.0, %v687
  %v689 = vpop.f32.mrb[0].mxu0
  %690 = vmatprep.mubr.f32.mxu0 %v362
  %691 = vmatmul.mubr.f32.gmra.mrb[0].mxu0 %v361
  %v692 = vpop.f32.mrb[0].mxu0
  %v693 = vadd.f32 0.0, %v692
  %v694 = vpop.f32.mrb[0].mxu0
  %695 = vmatprep.mubr.f32.mxu0 %v367
  %696 = vmatmul.mubr.f32.gmra.mrb[0].mxu0 %v366
  %v697 = vpop.f32.mrb[0].mxu0
  %v698 = vadd.f32 0.0, %v697
  %v699 = vpop.f32.mrb[0].mxu0
  %700 = vmatprep.mubr.f32.mxu0 %v372
  %701 = vmatmul.mubr.f32.gmra.mrb[0].mxu0 %v371
  %v702 = vpop.f32.mrb[0].mxu0
  %v703 = vadd.f32 0.0, %v702
  %v704 = vpop.f32.mrb[0].mxu0
  %705 = vmatprep.mubr.f32.mxu0 %v377
  %706 = vmatmul.mubr.f32.gmra.mrb[0].mxu0 %v376
  %v707 = vpop.f32.mrb[0].mxu0
  %v708 = vadd.f32 0.0, %v707
  %v709 = vpop.f32.mrb[0].mxu0
  %710 = vdwg.mxu0
  %711 = vmatprep.subr.mxu0 0.0
  %712 = vmatpush1.msra.mxu0 %v413
  %713 = vmatprep.subr.mxu0 0.0
  %714 = vmatpush1.msra.mxu0 %v414
  %715 = vmatprep.subr.mxu0 0.0
  %716 = vmatpush1.msra.mxu0 %v415
  %717 = vmatprep.subr.mxu0 0.0
  %718 = vmatpush1.msra.mxu0 %v416
  %719 = vmatprep.subr.mxu0 0.0
  %720 = vmatpush1.msra.mxu0 %v417
  %721 = vmatprep.subr.mxu0 0.0
  %722 = vmatpush1.msra.mxu0 %v418
  %723 = vmatprep.subr.mxu0 0.0
  %724 = vmatpush1.msra.mxu0 %v419
  %725 = vmatprep.subr.mxu0 0.0
  %726 = vmatpush1.msra.mxu0 %v420
  %727 = vmatprep.subr.mxu0 0.0
  %728 = vmatpush1.msra.mxu0 %v421
  %729 = vmatprep.subr.mxu0 0.0
  %730 = vmatpush1.msra.mxu0 %v422
  %731 = vmatprep.subr.mxu0 0.0
  %732 = vmatpush1.msra.mxu0 %v423
  %733 = vmatprep.subr.mxu0 0.0
  %734 = vmatpush1.msra.mxu0 %v424
  %735 = vmatprep.subr.mxu0 0.0
  %736 = vmatpush1.msra.mxu0 %v425
  %737 = vmatprep.subr.mxu0 0.0
  %738 = vmatpush1.msra.mxu0 %v426
  %739 = vmatprep.subr.mxu0 0.0
  %740 = vmatpush1.msra.mxu0 %v427
  %741 = vmatprep.subr.mxu0 0.0
  %742 = vmatpush1.msra.mxu0 %v428
  %743 = vmatprep.subr.mxu0 0.0
  %744 = vmatpush1.msra.mxu0 %v429
  %745 = vmatprep.subr.mxu0 0.0
  %746 = vmatpush1.msra.mxu0 %v430
  %747 = vmatprep.subr.mxu0 0.0
  %748 = vmatpush1.msra.mxu0 %v431
  %749 = vmatprep.subr.mxu0 0.0
  %750 = vmatpush1.msra.mxu0 %v432
  %751 = vmatprep.subr.mxu0 0.0
  %752 = vmatpush1.msra.mxu0 %v433
  %753 = vmatprep.subr.mxu0 0.0
  %754 = vmatpush1.msra.mxu0 %v434
  %755 = vmatprep.subr.mxu0 0.0
  %756 = vmatpush1.msra.mxu0 %v435
  %757 = vmatprep.subr.mxu0 0.0
  %758 = vmatpush1.msra.mxu0 %v436
  %759 = vmatprep.subr.mxu0 0.0
  %760 = vmatpush1.msra.mxu0 %v437
  %761 = vmatprep.subr.mxu0 0.0
  %762 = vmatpush1.msra.mxu0 %v438
  %763 = vmatprep.subr.mxu0 0.0
  %764 = vmatpush1.msra.mxu0 %v439
  %765 = vmatprep.subr.mxu0 0.0
  %766 = vmatpush1.msra.mxu0 %v440
  %767 = vmatprep.subr.mxu0 0.0
  %768 = vmatpush1.msra.mxu0 %v441
  %769 = vmatprep.subr.mxu0 0.0
  %770 = vmatpush1.msra.mxu0 %v442
  %771 = vmatprep.subr.mxu0 0.0
  %772 = vmatpush1.msra.mxu0 %v443
  %773 = vmatprep.subr.mxu0 0.0
  %774 = vmatpush1.msra.mxu0 %v444
  %775 = vmatprep.mubr.f32.mxu0 %v264
  %776 = vmatmul.mubr.f32.gmra.mrb[0].mxu0 %v263
  %v777 = vpop.f32.mrb[0].mxu0
  %v778 = vadd.f32 %v593, %v777
  %v779 = vpop.f32.mrb[0].mxu0
  %780 = vmatprep.mubr.f32.mxu0 %v269
  %781 = vmatmul.mubr.f32.gmra.mrb[0].mxu0 %v268
  %v782 = vpop.f32.mrb[0].mxu0
  %v783 = vadd.f32 %v598, %v782
  %v784 = vpop.f32.mrb[0].mxu0
  %785 = vmatprep.mubr.f32.mxu0 %v274
  %786 = vmatmul.mubr.f32.gmra.mrb[0].mxu0 %v273
  %v787 = vpop.f32.mrb[0].mxu0
  %v788 = vadd.f32 %v603, %v787
  %v789 = vpop.f32.mrb[0].mxu0
  %790 = vmatprep.mubr.f32.mxu0 %v279
  %791 = vmatmul.mubr.f32.gmra.mrb[0].mxu0 %v278
  %v792 = vpop.f32.mrb[0].mxu0
  %v793 = vadd.f32 %v608, %v792
  %v794 = vpop.f32.mrb[0].mxu0
  %795 = vmatprep.mubr.f32.mxu0 %v284
  %796 = vmatmul.mubr.f32.gmra.mrb[0].mxu0 %v283
  %v797 = vpop.f32.mrb[0].mxu0
  %v798 = vadd.f32 %v613, %v797
  %v799 = vpop.f32.mrb[0].mxu0
  %800 = vmatprep.mubr.f32.mxu0 %v289
  %801 = vmatmul.mubr.f32.gmra.mrb[0].mxu0 %v288
  %v802 = vpop.f32.mrb[0].mxu0
  %v803 = vadd.f32 %v618, %v802
  %v804 = vpop.f32.mrb[0].mxu0
  %805 = vmatprep.mubr.f32.mxu0 %v294
  %806 = vmatmul.mubr.f32.gmra.mrb[0].mxu0 %v293
  %v807 = vpop.f32.mrb[0].mxu0
  %v808 = vadd.f32 %v623, %v807
  %v809 = vpop.f32.mrb[0].mxu0
  %810 = vmatprep.mubr.f32.mxu0 %v299
  %811 = vmatmul.mubr.f32.gmra.mrb[0].mxu0 %v298
  %v812 = vpop.f32.mrb[0].mxu0
  %v813 = vadd.f32 %v628, %v812
  %v814 = vpop.f32.mrb[0].mxu0
  %815 = vmatprep.mubr.f32.mxu0 %v304
  %816 = vmatmul.mubr.f32.gmra.mrb[0].mxu0 %v303
  %v817 = vpop.f32.mrb[0].mxu0
  %v818 = vadd.f32 %v633, %v817
  %v819 = vpop.f32.mrb[0].mxu0
  %820 = vmatprep.mubr.f32.mxu0 %v309
  %821 = vmatmul.mubr.f32.gmra.mrb[0].mxu0 %v308
  %v822 = vpop.f32.mrb[0].mxu0
  %v823 = vadd.f32 %v638, %v822
  %v824 = vpop.f32.mrb[0].mxu0
  %825 = vmatprep.mubr.f32.mxu0 %v314
  %826 = vmatmul.mubr.f32.gmra.mrb[0].mxu0 %v313
  %v827 = vpop.f32.mrb[0].mxu0
  %v828 = vadd.f32 %v643, %v827
  %v829 = vpop.f32.mrb[0].mxu0
  %830 = vmatprep.mubr.f32.mxu0 %v319
  %831 = vmatmul.mubr.f32.gmra.mrb[0].mxu0 %v318
  %v832 = vpop.f32.mrb[0].mxu0
  %v833 = vadd.f32 %v648, %v832
  %v834 = vpop.f32.mrb[0].mxu0
  %835 = vmatprep.mubr.f32.mxu0 %v324
  %836 = vmatmul.mubr.f32.gmra.mrb[0].mxu0 %v323
  %v837 = vpop.f32.mrb[0].mxu0
  %v838 = vadd.f32 %v653, %v837
  %v839 = vpop.f32.mrb[0].mxu0
  %840 = vmatprep.mubr.f32.mxu0 %v329
  %841 = vmatmul.mubr.f32.gmra.mrb[0].mxu0 %v328
  %v842 = vpop.f32.mrb[0].mxu0
  %v843 = vadd.f32 %v658, %v842
  %v844 = vpop.f32.mrb[0].mxu0
  %845 = vmatprep.mubr.f32.mxu0 %v334
  %846 = vmatmul.mubr.f32.gmra.mrb[0].mxu0 %v333
  %v847 = vpop.f32.mrb[0].mxu0
  %v848 = vadd.f32 %v663, %v847
  %v849 = vpop.f32.mrb[0].mxu0
  %850 = vmatprep.mubr.f32.mxu0 %v339
  %851 = vmatmul.mubr.f32.gmra.mrb[0].mxu0 %v338
  %v852 = vpop.f32.mrb[0].mxu0
  %v853 = vadd.f32 %v668, %v852
  %v854 = vpop.f32.mrb[0].mxu0
  %855 = vmatprep.mubr.f32.mxu0 %v344
  %856 = vmatmul.mubr.f32.gmra.mrb[0].mxu0 %v343
  %v857 = vpop.f32.mrb[0].mxu0
  %v858 = vadd.f32 %v673, %v857
  %v859 = vpop.f32.mrb[0].mxu0
  %860 = vmatprep.mubr.f32.mxu0 %v349
  %861 = vmatmul.mubr.f32.gmra.mrb[0].mxu0 %v348
  %v862 = vpop.f32.mrb[0].mxu0
  %v863 = vadd.f32 %v678, %v862
  %v864 = vpop.f32.mrb[0].mxu0
  %865 = vmatprep.mubr.f32.mxu0 %v354
  %866 = vmatmul.mubr.f32.gmra.mrb[0].mxu0 %v353
  %v867 = vpop.f32.mrb[0].mxu0
  %v868 = vadd.f32 %v683, %v867
  %v869 = vpop.f32.mrb[0].mxu0
  %870 = vmatprep.mubr.f32.mxu0 %v359
  %871 = vmatmul.mubr.f32.gmra.mrb[0].mxu0 %v358
  %v872 = vpop.f32.mrb[0].mxu0
  %v873 = vadd.f32 %v688, %v872
  %v874 = vpop.f32.mrb[0].mxu0
  %875 = vmatprep.mubr.f32.mxu0 %v364
  %876 = vmatmul.mubr.f32.gmra.mrb[0].mxu0 %v363
  %v877 = vpop.f32.mrb[0].mxu0
  %v878 = vadd.f32 %v693, %v877
  %v879 = vpop.f32.mrb[0].mxu0
  %880 = vmatprep.mubr.f32.mxu0 %v369
  %881 = vmatmul.mubr.f32.gmra.mrb[0].mxu0 %v368
  %v882 = vpop.f32.mrb[0].mxu0
  %v883 = vadd.f32 %v698, %v882
  %v884 = vpop.f32.mrb[0].mxu0
  %885 = vmatprep.mubr.f32.mxu0 %v374
  %886 = vmatmul.mubr.f32.gmra.mrb[0].mxu0 %v373
  %v887 = vpop.f32.mrb[0].mxu0
  %v888 = vadd.f32 %v703, %v887
  %v889 = vpop.f32.mrb[0].mxu0
  %890 = vmatprep.mubr.f32.mxu0 %v379
  %891 = vmatmul.mubr.f32.gmra.mrb[0].mxu0 %v378
  %v892 = vpop.f32.mrb[0].mxu0
  %v893 = vadd.f32 %v708, %v892
  %v894 = vpop.f32.mrb[0].mxu0
  %895 = vdwg.mxu0
  %896 = vmatprep.subr.mxu0 0.0
  %897 = vmatpush1.msra.mxu0 %v445
  %898 = vmatprep.subr.mxu0 0.0
  %899 = vmatpush1.msra.mxu0 %v446
  %900 = vmatprep.subr.mxu0 0.0
  %901 = vmatpush1.msra.mxu0 %v447
  %902 = vmatprep.subr.mxu0 0.0
  %903 = vmatpush1.msra.mxu0 %v524
  %904 = vmatprep.subr.mxu0 0.0
  %905 = vmatpush1.msra.mxu0 0.0
  %906 = vmatprep.subr.mxu0 0.0
  %907 = vmatpush1.msra.mxu0 0.0
  %908 = vmatprep.subr.mxu0 0.0
  %909 = vmatpush1.msra.mxu0 0.0
  %910 = vmatprep.subr.mxu0 0.0
  %911 = vmatpush1.msra.mxu0 0.0
  %912 = vmatprep.subr.mxu0 0.0
  %913 = vmatpush1.msra.mxu0 0.0
  %914 = vmatprep.subr.mxu0 0.0
  %915 = vmatpush1.msra.mxu0 0.0
  %916 = vmatprep.subr.mxu0 0.0
  %917 = vmatpush1.msra.mxu0 0.0
  %918 = vmatprep.subr.mxu0 0.0
  %919 = vmatpush1.msra.mxu0 0.0
  %920 = vmatprep.subr.mxu0 0.0
  %921 = vmatpush1.msra.mxu0 0.0
  %922 = vmatprep.subr.mxu0 0.0
  %923 = vmatpush1.msra.mxu0 0.0
  %924 = vmatprep.subr.mxu0 0.0
  %925 = vmatpush1.msra.mxu0 0.0
  %926 = vmatprep.subr.mxu0 0.0
  %927 = vmatpush1.msra.mxu0 0.0
  %928 = vmatprep.subr.mxu0 0.0
  %929 = vmatpush1.msra.mxu0 0.0
  %930 = vmatprep.subr.mxu0 0.0
  %931 = vmatpush1.msra.mxu0 0.0
  %932 = vmatprep.subr.mxu0 0.0
  %933 = vmatpush1.msra.mxu0 0.0
  %934 = vmatprep.subr.mxu0 0.0
  %935 = vmatpush1.msra.mxu0 0.0
  %936 = vmatprep.subr.mxu0 0.0
  %937 = vmatpush1.msra.mxu0 0.0
  %938 = vmatprep.subr.mxu0 0.0
  %939 = vmatpush1.msra.mxu0 0.0
  %940 = vmatprep.subr.mxu0 0.0
  %941 = vmatpush1.msra.mxu0 0.0
  %942 = vmatprep.subr.mxu0 0.0
  %943 = vmatpush1.msra.mxu0 0.0
  %944 = vmatprep.subr.mxu0 0.0
  %945 = vmatpush1.msra.mxu0 0.0
  %946 = vmatprep.subr.mxu0 0.0
  %947 = vmatpush1.msra.mxu0 0.0
  %948 = vmatprep.subr.mxu0 0.0
  %949 = vmatpush1.msra.mxu0 0.0
  %950 = vmatprep.subr.mxu0 0.0
  %951 = vmatpush1.msra.mxu0 0.0
  %952 = vmatprep.subr.mxu0 0.0
  %953 = vmatpush1.msra.mxu0 0.0
  %954 = vmatprep.subr.mxu0 0.0
  %955 = vmatpush1.msra.mxu0 0.0
  %956 = vmatprep.subr.mxu0 0.0
  %957 = vmatpush1.msra.mxu0 0.0
  %958 = vmatprep.subr.mxu0 0.0
  %959 = vmatpush1.msra.mxu0 0.0
  %960 = vmatprep.mubr.f32.mxu0 0.0
  %961 = vmatmul.mubr.f32.gmra.mrb[0].mxu0 %v451
  %v962 = vpop.f32.mrb[0].mxu0
  %v963 = vadd.f32 %v778, %v962
  %v964 = vpop.f32.mrb[0].mxu0
  %965 = vmatprep.mubr.f32.mxu0 0.0
  %966 = vmatmul.mubr.f32.gmra.mrb[0].mxu0 %v454
  %v967 = vpop.f32.mrb[0].mxu0
  %v968 = vadd.f32 %v783, %v967
  %v969 = vpop.f32.mrb[0].mxu0
  %970 = vmatprep.mubr.f32.mxu0 0.0
  %971 = vmatmul.mubr.f32.gmra.mrb[0].mxu0 %v457
  %v972 = vpop.f32.mrb[0].mxu0
  %v973 = vadd.f32 %v788, %v972
  %v974 = vpop.f32.mrb[0].mxu0
  %975 = vmatprep.mubr.f32.mxu0 0.0
  %976 = vmatmul.mubr.f32.gmra.mrb[0].mxu0 %v460
  %v977 = vpop.f32.mrb[0].mxu0
  %v978 = vadd.f32 %v793, %v977
  %v979 = vpop.f32.mrb[0].mxu0
  %980 = vmatprep.mubr.f32.mxu0 0.0
  %981 = vmatmul.mubr.f32.gmra.mrb[0].mxu0 %v463
  %v982 = vpop.f32.mrb[0].mxu0
  %v983 = vadd.f32 %v798, %v982
  %v984 = vpop.f32.mrb[0].mxu0
  %985 = vmatprep.mubr.f32.mxu0 0.0
  %986 = vmatmul.mubr.f32.gmra.mrb[0].mxu0 %v466
  %v987 = vpop.f32.mrb[0].mxu0
  %v988 = vadd.f32 %v803, %v987
  %v989 = vpop.f32.mrb[0].mxu0
  %990 = vmatprep.mubr.f32.mxu0 0.0
  %991 = vmatmul.mubr.f32.gmra.mrb[0].mxu0 %v469
  %v992 = vpop.f32.mrb[0].mxu0
  %v993 = vadd.f32 %v808, %v992
  %v994 = vpop.f32.mrb[0].mxu0
  %995 = vmatprep.mubr.f32.mxu0 0.0
  %996 = vmatmul.mubr.f32.gmra.mrb[0].mxu0 %v472
  %v997 = vpop.f32.mrb[0].mxu0
  %v998 = vadd.f32 %v813, %v997
  %v999 = vpop.f32.mrb[0].mxu0
  %1000 = vmatprep.mubr.f32.mxu0 0.0
  %1001 = vmatmul.mubr.f32.gmra.mrb[0].mxu0 %v475
  %v1002 = vpop.f32.mrb[0].mxu0
  %v1003 = vadd.f32 %v818, %v1002
  %v1004 = vpop.f32.mrb[0].mxu0
  %1005 = vmatprep.mubr.f32.mxu0 0.0
  %1006 = vmatmul.mubr.f32.gmra.mrb[0].mxu0 %v478
  %v1007 = vpop.f32.mrb[0].mxu0
  %v1008 = vadd.f32 %v823, %v1007
  %v1009 = vpop.f32.mrb[0].mxu0
  %1010 = vmatprep.mubr.f32.mxu0 0.0
  %1011 = vmatmul.mubr.f32.gmra.mrb[0].mxu0 %v481
  %v1012 = vpop.f32.mrb[0].mxu0
  %v1013 = vadd.f32 %v828, %v1012
  %v1014 = vpop.f32.mrb[0].mxu0
  %1015 = vmatprep.mubr.f32.mxu0 0.0
  %1016 = vmatmul.mubr.f32.gmra.mrb[0].mxu0 %v484
  %v1017 = vpop.f32.mrb[0].mxu0
  %v1018 = vadd.f32 %v833, %v1017
  %v1019 = vpop.f32.mrb[0].mxu0
  %1020 = vmatprep.mubr.f32.mxu0 0.0
  %1021 = vmatmul.mubr.f32.gmra.mrb[0].mxu0 %v487
  %v1022 = vpop.f32.mrb[0].mxu0
  %v1023 = vadd.f32 %v838, %v1022
  %v1024 = vpop.f32.mrb[0].mxu0
  %1025 = vmatprep.mubr.f32.mxu0 0.0
  %1026 = vmatmul.mubr.f32.gmra.mrb[0].mxu0 %v490
  %v1027 = vpop.f32.mrb[0].mxu0
  %v1028 = vadd.f32 %v843, %v1027
  %v1029 = vpop.f32.mrb[0].mxu0
  %1030 = vmatprep.mubr.f32.mxu0 0.0
  %1031 = vmatmul.mubr.f32.gmra.mrb[0].mxu0 %v493
  %v1032 = vpop.f32.mrb[0].mxu0
  %v1033 = vadd.f32 %v848, %v1032
  %v1034 = vpop.f32.mrb[0].mxu0
  %1035 = vmatprep.mubr.f32.mxu0 0.0
  %1036 = vmatmul.mubr.f32.gmra.mrb[0].mxu0 %v496
  %v1037 = vpop.f32.mrb[0].mxu0
  %v1038 = vadd.f32 %v853, %v1037
  %v1039 = vpop.f32.mrb[0].mxu0
  %1040 = vmatprep.mubr.f32.mxu0 0.0
  %1041 = vmatmul.mubr.f32.gmra.mrb[0].mxu0 %v499
  %v1042 = vpop.f32.mrb[0].mxu0
  %v1043 = vadd.f32 %v858, %v1042
  %v1044 = vpop.f32.mrb[0].mxu0
  %1045 = vmatprep.mubr.f32.mxu0 0.0
  %1046 = vmatmul.mubr.f32.gmra.mrb[0].mxu0 %v502
  %v1047 = vpop.f32.mrb[0].mxu0
  %v1048 = vadd.f32 %v863, %v1047
  %v1049 = vpop.f32.mrb[0].mxu0
  %1050 = vmatprep.mubr.f32.mxu0 0.0
  %1051 = vmatmul.mubr.f32.gmra.mrb[0].mxu0 %v505
  %v1052 = vpop.f32.mrb[0].mxu0
  %v1053 = vadd.f32 %v868, %v1052
  %v1054 = vpop.f32.mrb[0].mxu0
  %1055 = vmatprep.mubr.f32.mxu0 0.0
  %1056 = vmatmul.mubr.f32.gmra.mrb[0].mxu0 %v508
  %v1057 = vpop.f32.mrb[0].mxu0
  %v1058 = vadd.f32 %v873, %v1057
  %v1059 = vpop.f32.mrb[0].mxu0
  %1060 = vmatprep.mubr.f32.mxu0 0.0
  %1061 = vmatmul.mubr.f32.gmra.mrb[0].mxu0 %v511
  %v1062 = vpop.f32.mrb[0].mxu0
  %v1063 = vadd.f32 %v878, %v1062
  %v1064 = vpop.f32.mrb[0].mxu0
  %1065 = vmatprep.mubr.f32.mxu0 0.0
  %1066 = vmatmul.mubr.f32.gmra.mrb[0].mxu0 %v514
  %v1067 = vpop.f32.mrb[0].mxu0
  %v1068 = vadd.f32 %v883, %v1067
  %v1069 = vpop.f32.mrb[0].mxu0
  %1070 = vmatprep.mubr.f32.mxu0 0.0
  %1071 = vmatmul.mubr.f32.gmra.mrb[0].mxu0 %v517
  %v1072 = vpop.f32.mrb[0].mxu0
  %v1073 = vadd.f32 %v888, %v1072
  %v1074 = vpop.f32.mrb[0].mxu0
  %1075 = vmatprep.mubr.f32.mxu0 0.0
  %1076 = vmatmul.mubr.f32.gmra.mrb[0].mxu0 %v520
  %v1077 = vpop.f32.mrb[0].mxu0
  %v1078 = vadd.f32 %v893, %v1077
  %v1079 = vpop.f32.mrb[0].mxu0
  %1080 = vdwg.mxu0
  %v1081 = vlaneseq
  %v1082 = vshrl.u32 %v1081, 7
  %v1083 = vadd.s32 %v1082, 8
  %v1084 = vadd.s32 %v1082, 16
  %v1085 = vadd.s32 %v1082, 24
  %v1086 = vadd.s32 %v1082, 32
  %v1087 = vadd.s32 %v1082, 40
  %v1088 = vadd.s32 %v1082, 48
  %v1089 = vadd.s32 %v1082, 56
  %v1090 = vlaneseq
  %v1091 = vand.u32 %v1090, 127
  %v1092 = vstv %s20
  %vm1093 = vcmp.lt.s32.totalorder %v1082, %v1092
  %vm1094 = vcmp.lt.s32.totalorder %v1083, %v1092
  %vm1095 = vcmp.lt.s32.totalorder %v1084, %v1092
  %vm1096 = vcmp.lt.s32.totalorder %v1085, %v1092
  %vm1097 = vcmp.lt.s32.totalorder %v1086, %v1092
  %vm1098 = vcmp.lt.s32.totalorder %v1087, %v1092
  %vm1099 = vcmp.lt.s32.totalorder %v1088, %v1092
  %vm1100 = vcmp.lt.s32.totalorder %v1089, %v1092
  %vm1101 = vcmp.ge.s32.totalorder %v1091, 23
  %vm1102 = vcmp.lt.s32.totalorder %v1091, 44
  %vm1103 = vmand %vm1101, %vm1102
  %v1104 = vsub.f32 1.0, %v963
  %v1105 = vsub.f32 1.0, %v968
  %v1106 = vsub.f32 1.0, %v973
  %v1107 = vsub.f32 1.0, %v978
  %v1108 = vsub.f32 1.0, %v983
  %v1109 = vsub.f32 1.0, %v988
  %v1110 = vsub.f32 1.0, %v993
  %v1111 = vsub.f32 1.0, %v998
  %s1112 = scalar_select %p19, 1, 0
  %v1113 = vstv %s1112
  %vm1114 = vcmp.eq.s32.totalorder %v1113, 1
  %v1115 = vsel %vm1114, %v1104, %v963
  %v1116 = vsel %vm1114, %v1105, %v968
  %v1117 = vsel %vm1114, %v1106, %v973
  %v1118 = vsel %vm1114, %v1107, %v978
  %v1119 = vsel %vm1114, %v1108, %v983
  %v1120 = vsel %vm1114, %v1109, %v988
  %v1121 = vsel %vm1114, %v1110, %v993
  %v1122 = vsel %vm1114, %v1111, %v998
  %1131 = vrot.lane.b32.xlu0 %v344, 127
  %v1132 = vpop.permute.xlu0 %1131
  %1133 = vrot.lane.b32.xlu0 %v349, 127
  %v1134 = vpop.permute.xlu0 %1133
  %1135 = vrot.lane.b32.xlu0 %v354, 127
  %v1136 = vpop.permute.xlu0 %1135
  %1137 = vrot.lane.b32.xlu0 %v359, 127
  %v1138 = vpop.permute.xlu0 %1137
  %1139 = vrot.lane.b32.xlu0 %v364, 127
  %v1140 = vpop.permute.xlu0 %1139
  %1141 = vrot.lane.b32.xlu0 %v369, 127
  %v1142 = vpop.permute.xlu0 %1141
  %1143 = vrot.lane.b32.xlu0 %v374, 127
  %v1144 = vpop.permute.xlu0 %1143
  %1145 = vrot.lane.b32.xlu0 %v379, 127
  %v1146 = vpop.permute.xlu0 %1145
  %v1155 = vsel %vm1114, %v344, %v1132
  %v1156 = vsel %vm1114, %v349, %v1134
  %v1157 = vsel %vm1114, %v354, %v1136
  %v1158 = vsel %vm1114, %v359, %v1138
  %v1159 = vsel %vm1114, %v364, %v1140
  %v1160 = vsel %vm1114, %v369, %v1142
  %v1161 = vsel %vm1114, %v374, %v1144
  %v1162 = vsel %vm1114, %v379, %v1146
  %1164 = vset.pattern.permute.xlu0 118
  %1165 = vperm.xlu0 %1164, %v1155
  %v1166 = vpop.permute.xlu0 %1165
  %1169 = vset.pattern.permute.xlu0 118
  %1170 = vperm.xlu0 %1169, %v1156
  %v1171 = vpop.permute.xlu0 %1170
  %1174 = vset.pattern.permute.xlu0 118
  %1175 = vperm.xlu0 %1174, %v1157
  %v1176 = vpop.permute.xlu0 %1175
  %1179 = vset.pattern.permute.xlu0 118
  %1180 = vperm.xlu0 %1179, %v1158
  %v1181 = vpop.permute.xlu0 %1180
  %1184 = vset.pattern.permute.xlu0 118
  %1185 = vperm.xlu0 %1184, %v1159
  %v1186 = vpop.permute.xlu0 %1185
  %1189 = vset.pattern.permute.xlu0 118
  %1190 = vperm.xlu0 %1189, %v1160
  %v1191 = vpop.permute.xlu0 %1190
  %1194 = vset.pattern.permute.xlu0 118
  %1195 = vperm.xlu0 %1194, %v1161
  %v1196 = vpop.permute.xlu0 %1195
  %1199 = vset.pattern.permute.xlu0 118
  %1200 = vperm.xlu0 %1199, %v1162
  %v1201 = vpop.permute.xlu0 %1200
  %v1203 = vadd.f32 %v1043, %v1166
  %v1204 = vadd.f32 %v1048, %v1171
  %v1205 = vadd.f32 %v1053, %v1176
  %v1206 = vadd.f32 %v1058, %v1181
  %v1207 = vadd.f32 %v1063, %v1186
  %v1208 = vadd.f32 %v1068, %v1191
  %v1209 = vadd.f32 %v1073, %v1196
  %v1210 = vadd.f32 %v1078, %v1201
  %v1211 = vsel %vm1103, %v1203, %v1043
  %v1212 = vsel %vm1103, %v1204, %v1048
  %v1213 = vsel %vm1103, %v1205, %v1053
  %v1214 = vsel %vm1103, %v1206, %v1058
  %v1215 = vsel %vm1103, %v1207, %v1063
  %v1216 = vsel %vm1103, %v1208, %v1068
  %v1217 = vsel %vm1103, %v1209, %v1073
  %v1218 = vsel %vm1103, %v1210, %v1078
  %v1219 = vsel %vm1093, %v1115, 0.0
  %v1220 = vsel %vm1094, %v1116, 0.0
  %v1221 = vsel %vm1095, %v1117, 0.0
  %v1222 = vsel %vm1096, %v1118, 0.0
  %v1223 = vsel %vm1097, %v1119, 0.0
  %v1224 = vsel %vm1098, %v1120, 0.0
  %v1225 = vsel %vm1099, %v1121, 0.0
  %v1226 = vsel %vm1100, %v1122, 0.0
  %1227 = vst [vmem:[%s3] sm:$0xff] %v1219
  %1228 = vst [vmem:[%s3 + $0x8] sm:$0xff] %v1220
  %1229 = vst [vmem:[%s3 + $0x10] sm:$0xff] %v1221
  %1230 = vst [vmem:[%s3 + $0x18] sm:$0xff] %v1222
  %1231 = vst [vmem:[%s3 + $0x20] sm:$0xff] %v1223
  %1232 = vst [vmem:[%s3 + $0x28] sm:$0xff] %v1224
  %1233 = vst [vmem:[%s3 + $0x30] sm:$0xff] %v1225
  %1234 = vst [vmem:[%s3 + $0x38] sm:$0xff] %v1226
  %v1235 = vsel %vm1093, %v1003, 0.0
  %v1236 = vsel %vm1094, %v1008, 0.0
  %v1237 = vsel %vm1095, %v1013, 0.0
  %v1238 = vsel %vm1096, %v1018, 0.0
  %v1239 = vsel %vm1097, %v1023, 0.0
  %v1240 = vsel %vm1098, %v1028, 0.0
  %v1241 = vsel %vm1099, %v1033, 0.0
  %v1242 = vsel %vm1100, %v1038, 0.0
  %1243 = vst [vmem:[%s3 + $0x40] sm:$0xff] %v1235
  %1244 = vst [vmem:[%s3 + $0x48] sm:$0xff] %v1236
  %1245 = vst [vmem:[%s3 + $0x50] sm:$0xff] %v1237
  %1246 = vst [vmem:[%s3 + $0x58] sm:$0xff] %v1238
  %1247 = vst [vmem:[%s3 + $0x60] sm:$0xff] %v1239
  %1248 = vst [vmem:[%s3 + $0x68] sm:$0xff] %v1240
  %1249 = vst [vmem:[%s3 + $0x70] sm:$0xff] %v1241
  %1250 = vst [vmem:[%s3 + $0x78] sm:$0xff] %v1242
  %v1251 = vsel %vm1093, %v1211, 0.0
  %v1252 = vsel %vm1094, %v1212, 0.0
  %v1253 = vsel %vm1095, %v1213, 0.0
  %v1254 = vsel %vm1096, %v1214, 0.0
  %v1255 = vsel %vm1097, %v1215, 0.0
  %v1256 = vsel %vm1098, %v1216, 0.0
  %v1257 = vsel %vm1099, %v1217, 0.0
  %v1258 = vsel %vm1100, %v1218, 0.0
  %1259 = vst [vmem:[%s3 + $0x80] sm:$0xff] %v1251
  %1260 = vst [vmem:[%s3 + $0x88] sm:$0xff] %v1252
  %1261 = vst [vmem:[%s3 + $0x90] sm:$0xff] %v1253
  %1262 = vst [vmem:[%s3 + $0x98] sm:$0xff] %v1254
  %1263 = vst [vmem:[%s3 + $0xa0] sm:$0xff] %v1255
  %1264 = vst [vmem:[%s3 + $0xa8] sm:$0xff] %v1256
  %1265 = vst [vmem:[%s3 + $0xb0] sm:$0xff] %v1257
  %1266 = vst [vmem:[%s3 + $0xb8] sm:$0xff] %v1258
  // Predicated region
  $region10: #{preprocess.1} parent=0 // pred_check
    _
  $region11: #{preprocess.1} parent=0 // pred_check_branch
    %1268 = sbr.rel (0) target = $region13
  $region12: #{preprocess.1} parent=0 // pred_region
    _
  $region13: #{preprocess.1} parent=0 // pred_fallthru
    _
  // Predicated region
  $region14: #{preprocess.1} parent=0 // pred_check
    _
  $region15: #{preprocess.1} parent=0 // pred_check_branch
    %1270 = sbr.rel (0) target = $region17
  $region16: #{preprocess.1} parent=0 // pred_region
    _
  $region17: #{preprocess.1} parent=0 // pred_fallthru
    _

</llo_original>
